<compile_context>
chip_gen: v7x
topology: tpu7x:2x2x1
jax: 0.10.0
libtpu: 0.0.40
codegen_flags: <defaults>
</compile_context>

<pallas_src>
import functools

import jax
import jax.numpy as jnp
import numpy as np
from jax import lax
from jax.experimental import pallas as pl
from jax.experimental.pallas import tpu as pltpu


def _round_up(x, m):
    return (x + m - 1) // m * m


def _ceil_div(a, b):
    return -(-a // b)


# ----------------------------- Pallas kernel -------------------------------


def _make_conv_kernel(pieces, tr, wo, p, cout_blk):
    """One (row-tile, cout-tile) output block of strided conv + bias + ReLU.

    The input is the phase-packed (space-to-depth) image resident in VMEM.
    Each (dr, dc) piece contributes a plain 2-D MXU matmul with
    M = tr*Wo rows and K = s*s*Cin, accumulated in f32.  Bias + ReLU run once
    in the epilogue.  No broadcast-replicated weights, no batched matmuls.
    """

    def kernel(x_ref, w_ref, b_ref, o_ref):
        # x_ref: (Hph, Wph, P)          bf16  (resident across cout/row axes)
        # w_ref: (n_pieces, P, Ct)      bf16  (resident across n/row axes)
        # b_ref: (1, Ct)                f32
        # o_ref: (tr*Wo, Ct)            f32
        j = pl.program_id(2)                      # row-tile index (innermost)
        r0 = pl.multiple_of(j * tr, tr)
        acc = None
        for t, (dr, dc) in enumerate(pieces):
            blk = x_ref[pl.ds(r0 + dr, tr), dc:dc + wo, :]     # (tr, Wo, P)
            lhs = blk.reshape(tr * wo, p)                      # 2-D MXU operand
            part = jnp.dot(lhs, w_ref[t],
                           preferred_element_type=jnp.float32)
            acc = part if acc is None else acc + part
        acc = jnp.maximum(acc + b_ref[...], 0.0)               # bias + ReLU once
        o_ref[...] = acc.astype(o_ref.dtype)

    return kernel


# ------------------------------- wrappers ----------------------------------


def _pick_row_block(ho, wo, n_outer_steps):
    """Largest row tile (divisor of Ho) with M = tr*Wo <= 1024 rows that still
    leaves >= 8 total grid steps when possible (pipeline depth / megacore)."""
    divs = [d for d in range(1, ho + 1) if ho % d == 0 and d * wo <= 1024]
    if not divs:
        divs = [1]
    deep = [d for d in divs if n_outer_steps * (ho // d) >= 8]
    return max(deep) if deep else max(divs)


@functools.partial(jax.jit, static_argnames=("stride", "padding"))
def conv_bias_relu_pallas(x_nchw, w_oihw, bias, *, stride, padding):
    """Strided conv2d + bias + ReLU (stands in for the ResNet 'layer4' stage)."""
    N, Cin, H, W = x_nchw.shape
    Cout, _, KH, KW = w_oihw.shape
    s = stride

    Hp, Wp = H + 2 * padding, W + 2 * padding
    Ho = (Hp - KH) // s + 1
    Wo = (Wp - KW) // s + 1
    kb_h, kb_w = _ceil_div(KH, s), _ceil_div(KW, s)
    # phase-block extent must cover the (kb_h x kb_w) window of the last row
    Hph = max(_ceil_div(Hp, s), Ho + kb_h - 1)
    Wph = max(_ceil_div(Wp, s), Wo + kb_w - 1)
    P = s * s * Cin                                # phase-packed channels (K)

    # ---- wrapper layout plumbing (fused by XLA under jit; ~1x HBM pass) ----
    x = jnp.transpose(x_nchw, (0, 2, 3, 1))        # NCHW -> NHWC
    x = jnp.pad(x, ((0, 0),
                    (padding, Hph * s - Hp + padding),
                    (padding, Wph * s - Wp + padding),
                    (0, 0)))
    # space-to-depth with phases folded into the channel (lane) dim:
    # lane-denser input than per-phase-plane packing, and no HBM im2col.
    xp = x.reshape(N, Hph, s, Wph, s, Cin)
    xp = jnp.transpose(xp, (0, 1, 3, 2, 4, 5)).reshape(N, Hph, Wph, P)
    xp = xp.astype(jnp.bfloat16)                   # MXU operand

    # Cout padding only when it is free (Cout >= 128); demo Cout=32 stays 32.
    Cout_pad = Cout if Cout < 128 else _round_up(Cout, 128)
    if Cout_pad <= 256:
        cout_blk = Cout_pad
    elif Cout_pad % 256 == 0:
        cout_blk = 256      # NOTE(v5e): 128 would hit the native MXU width
    else:
        cout_blk = 128
    cout_tiles = Cout_pad // cout_blk

    # weights: (kb_h*kb_w pieces, P, Cout_pad).  Rows for kernel taps outside
    # the KHxKW window are exactly zero, so they never contribute.
    w_hwio = jnp.transpose(w_oihw, (2, 3, 1, 0))                 # (KH,KW,Ci,Co)
    w_ext = jnp.zeros((kb_h * s, kb_w * s, Cin, Cout), w_hwio.dtype)
    w_ext = w_ext.at[:KH, :KW].set(w_hwio)
    w_ext = w_ext.reshape(kb_h, s, kb_w, s, Cin, Cout)
    w_ext = jnp.transpose(w_ext, (0, 2, 1, 3, 4, 5))             # dr,dc,ph,pw,..
    w_pieces = w_ext.reshape(kb_h * kb_w, P, Cout)
    if Cout_pad != Cout:
        w_pieces = jnp.pad(w_pieces, ((0, 0), (0, 0), (0, Cout_pad - Cout)))
    w_pieces = w_pieces.astype(jnp.bfloat16)
    b_pad = jnp.pad(bias, (0, Cout_pad - Cout)).reshape(1, Cout_pad)
    b_pad = b_pad.astype(jnp.float32)

    tr = _pick_row_block(Ho, Wo, N * cout_tiles)
    row_tiles = Ho // tr
    pieces = [(dr, dc) for dr in range(kb_h) for dc in range(kb_w)]

    flops = 2 * N * Ho * Wo * (kb_h * kb_w * P) * Cout_pad
    bytes_accessed = (xp.size * 2 + w_pieces.size * 2 + b_pad.size * 4
                      + N * Ho * Wo * Cout_pad * 4)

    # explicit VMEM budget (raised as blocks grow, capped below v7x physical)
    block_bytes = (Hph * Wph * P * 2
                   + kb_h * kb_w * P * cout_blk * 2
                   + cout_blk * 4
                   + tr * Wo * cout_blk * 4)
    vmem_limit = int(min(64 << 20, max(16 << 20, 6 * block_bytes)))

    kernel = _make_conv_kernel(pieces, tr, Wo, P, cout_blk)
    out = pl.pallas_call(
        kernel,
        # NOTE: f32 output keeps the tight reference check; a production
        # kernel would emit bf16 here to halve the writeback bandwidth.
        out_shape=jax.ShapeDtypeStruct((N, Ho * Wo, Cout_pad), jnp.float32),
        grid=(N, cout_tiles, row_tiles),
        in_specs=[
            # per-image phase block: resident across the cout/row axes
            pl.BlockSpec((None, Hph, Wph, P), lambda n, co, j: (n, 0, 0, 0)),
            # weight tile: resident across the batch/row axes
            pl.BlockSpec((kb_h * kb_w, P, cout_blk),
                         lambda n, co, j: (0, 0, co)),
            pl.BlockSpec((1, cout_blk), lambda n, co, j: (0, co)),
        ],
        out_specs=pl.BlockSpec((None, tr * Wo, cout_blk),
                               lambda n, co, j: (n, j, co)),
        compiler_params=pltpu.CompilerParams(
            dimension_semantics=("parallel", "parallel", "parallel"),
            vmem_limit_bytes=vmem_limit),
        cost_estimate=pl.CostEstimate(flops=flops, transcendentals=0,
                                      bytes_accessed=bytes_accessed),
    )(xp, w_pieces, b_pad)

    out = out.reshape(N, Ho, Wo, Cout_pad)
    if Cout_pad != Cout:
        out = out[..., :Cout]
    # NHWC -> NCHW kept only for torch-API parity; a NHWC consumer would skip it.
    return jnp.transpose(out, (0, 3, 1, 2))


def mask_nearest_resize(mask_bool, out_hw):
    """F.interpolate(mask[None].float(), size=out_hw).to(bool)[0] equivalent.

    Nearest-neighbour resize is a gather (src = floor(dst * in / out)); per the
    perf review this is pure indexing, not a Pallas kernel.
    """
    _, H, W = mask_bool.shape
    Ho, Wo = out_hw
    rows_src = (jnp.arange(Ho) * H) // Ho
    cols_src = (jnp.arange(Wo) * W) // Wo
    return mask_bool[:, rows_src][:, :, cols_src]


class BackboneBasePallas:
    """JAX/Pallas port of DETR BackboneBase (return_interm_layers=False)."""

    def __init__(self, in_channels=4, num_channels=32, kernel=3, stride=2,
                 padding=1, seed=0):
        kw, kb = jax.random.split(jax.random.PRNGKey(seed))
        # PyTorch conv weight layout (Cout, Cin, KH, KW)
        self.weight = 0.1 * jax.random.normal(
            kw, (num_channels, in_channels, kernel, kernel), jnp.float32)
        self.bias = 0.1 * jax.random.normal(kb, (num_channels,), jnp.float32)
        self.stride = stride
        self.padding = padding
        self.num_channels = num_channels
        # NOTE: parameter freezing (requires_grad_) is a training-time concern
        # with no forward-pass effect.

    def forward(self, tensors_nchw, mask_bool):
        # body(tensors) -> {'0': layer4-like feature map}
        xs = {
            "0": conv_bias_relu_pallas(
                tensors_nchw, self.weight, self.bias,
                stride=self.stride, padding=self.padding)
        }
        out = {}
        for name, x in xs.items():
            m = mask_nearest_resize(mask_bool, tuple(x.shape[-2:]))
            out[name] = (x, m)  # NestedTensor(x, mask)
        return out


# --------------------------------- main -------------------------------------


if __name__ == "__main__":
    key = jax.random.PRNGKey(0)
    N, C, H, W = 2, 4, 16, 16
    x = jax.random.normal(key, (N, C, H, W), jnp.float32)

    # padding-style mask: True where padded
    mask = jnp.zeros((N, H, W), dtype=bool)
    mask = mask.at[0, :, 12:].set(True)   # image 0 padded on the right
    mask = mask.at[1, 10:, :].set(True)   # image 1 padded on the bottom

    model = BackboneBasePallas(in_channels=C, num_channels=32,
                               kernel=3, stride=2, padding=1, seed=0)
    out = model.forward(x, mask)
    feat, out_mask = out["0"]
    feat = jax.block_until_ready(feat)
    out_mask = jax.block_until_ready(out_mask)

    # ---- reference check (plain JAX; same bf16 rounding of matmul operands) ----
    xb16 = x.astype(jnp.bfloat16).astype(jnp.float32)
    wb16 = model.weight.astype(jnp.bfloat16).astype(jnp.float32)
    x_nhwc = jnp.transpose(xb16, (0, 2, 3, 1))
    w_hwio = jnp.transpose(wb16, (2, 3, 1, 0))
    ref = lax.conv_general_dilated(
        x_nhwc, w_hwio, window_strides=(2, 2), padding=((1, 1), (1, 1)),
        dimension_numbers=("NHWC", "HWIO", "NHWC"),
        precision=lax.Precision.HIGHEST)
    ref = jnp.maximum(ref + model.bias[None, None, None, :], 0.0)
    ref = jnp.transpose(ref, (0, 3, 1, 2))

    Ho, Wo = feat.shape[-2:]
    rows_src = (jnp.arange(Ho) * H) // Ho
    cols_src = (jnp.arange(Wo) * W) // Wo
    mask_ref = mask[:, rows_src][:, :, cols_src]

    np.testing.assert_allclose(np.asarray(feat), np.asarray(ref),
                               rtol=1e-4, atol=1e-4)
    np.testing.assert_array_equal(np.asarray(out_mask), np.asarray(mask_ref))

    assert feat.shape == (N, model.num_channels, 8, 8)
    assert out_mask.shape == (N, 8, 8) and out_mask.dtype == jnp.bool_

    print("KERNEL_OK")
</pallas_src>

<mosaic_0001>
module attributes {stable_mosaic.version = 11 : i64} {
  func.func @kernel(%arg0: i32, %arg1: i32, %arg2: i32, %arg3: memref<1x9x9x16xbf16, #tpu.memory_space<vmem>>, %arg4: memref<4x16x32xbf16, #tpu.memory_space<vmem>>, %arg5: memref<1x32xf32, #tpu.memory_space<vmem>>, %arg6: memref<1x16x32xf32, #tpu.memory_space<vmem>>) attributes {dimension_semantics = [#tpu.dimension_semantics<parallel>, #tpu.dimension_semantics<parallel>, #tpu.dimension_semantics<parallel>], iteration_bounds = array<i64: 2, 1, 4>, scalar_prefetch = 0 : i64, scratch_operands = 0 : i64, tpu.core_type = #tpu.core_type<tc>, window_params = [{transform_indices = @transform_0, window_bounds = array<i64: 1, 9, 9, 16>}, {transform_indices = @transform_1, window_bounds = array<i64: 4, 16, 32>}, {transform_indices = @transform_2, window_bounds = array<i64: 1, 32>}, {transform_indices = @transform_3, window_bounds = array<i64: 1, 16, 32>}]} {
    %c2_i32 = arith.constant 2 : i32
    %0 = arith.muli %arg2, %c2_i32 : i32
    %1 = tpu.assume_multiple %0, 2 : i32
    %c0_i32 = arith.constant 0 : i32
    %2 = arith.addi %1, %c0_i32 : i32
    %c0 = arith.constant 0 : index
    %3 = arith.index_cast %2 : i32 to index
    %c0_0 = arith.constant 0 : index
    %c0_1 = arith.constant 0 : index
    %4 = vector.load %arg3[%c0, %3, %c0_0, %c0_1] : memref<1x9x9x16xbf16, #tpu.memory_space<vmem>>, vector<1x2x8x16xbf16>
    %5 = vector.shape_cast %4 : vector<1x2x8x16xbf16> to vector<2x8x16xbf16>
    %6 = vector.shape_cast %5 : vector<2x8x16xbf16> to vector<16x16xbf16>
    %c0_2 = arith.constant 0 : index
    %c0_3 = arith.constant 0 : index
    %c0_4 = arith.constant 0 : index
    %7 = vector.load %arg4[%c0_2, %c0_3, %c0_4] : memref<4x16x32xbf16, #tpu.memory_space<vmem>>, vector<1x16x32xbf16>
    %8 = vector.shape_cast %7 : vector<1x16x32xbf16> to vector<16x32xbf16>
    %cst = arith.constant dense<0.000000e+00> : vector<16x32xf32>
    %9 = tpu.matmul %6, %8, %cst {dimension_numbers = #tpu.dot_dimension_numbers<[1], [0], [0], [1], [0, 0, 1, 1], [], []>} : vector<16x16xbf16>, vector<16x32xbf16>, vector<16x32xf32> -> vector<16x32xf32>
    %c0_i32_5 = arith.constant 0 : i32
    %10 = arith.addi %1, %c0_i32_5 : i32
    %c0_6 = arith.constant 0 : index
    %11 = arith.index_cast %10 : i32 to index
    %c1 = arith.constant 1 : index
    %c0_7 = arith.constant 0 : index
    %12 = vector.load %arg3[%c0_6, %11, %c1, %c0_7] : memref<1x9x9x16xbf16, #tpu.memory_space<vmem>>, vector<1x2x8x16xbf16>
    %13 = vector.shape_cast %12 : vector<1x2x8x16xbf16> to vector<2x8x16xbf16>
    %14 = vector.shape_cast %13 : vector<2x8x16xbf16> to vector<16x16xbf16>
    %c1_8 = arith.constant 1 : index
    %c0_9 = arith.constant 0 : index
    %c0_10 = arith.constant 0 : index
    %15 = vector.load %arg4[%c1_8, %c0_9, %c0_10] : memref<4x16x32xbf16, #tpu.memory_space<vmem>>, vector<1x16x32xbf16>
    %16 = vector.shape_cast %15 : vector<1x16x32xbf16> to vector<16x32xbf16>
    %cst_11 = arith.constant dense<0.000000e+00> : vector<16x32xf32>
    %17 = tpu.matmul %14, %16, %cst_11 {dimension_numbers = #tpu.dot_dimension_numbers<[1], [0], [0], [1], [0, 0, 1, 1], [], []>} : vector<16x16xbf16>, vector<16x32xbf16>, vector<16x32xf32> -> vector<16x32xf32>
    %18 = arith.addf %9, %17 : vector<16x32xf32>
    %c1_i32 = arith.constant 1 : i32
    %19 = arith.addi %1, %c1_i32 : i32
    %c0_12 = arith.constant 0 : index
    %20 = arith.index_cast %19 : i32 to index
    %c0_13 = arith.constant 0 : index
    %c0_14 = arith.constant 0 : index
    %21 = vector.load %arg3[%c0_12, %20, %c0_13, %c0_14] : memref<1x9x9x16xbf16, #tpu.memory_space<vmem>>, vector<1x2x8x16xbf16>
    %22 = vector.shape_cast %21 : vector<1x2x8x16xbf16> to vector<2x8x16xbf16>
    %23 = vector.shape_cast %22 : vector<2x8x16xbf16> to vector<16x16xbf16>
    %c2 = arith.constant 2 : index
    %c0_15 = arith.constant 0 : index
    %c0_16 = arith.constant 0 : index
    %24 = vector.load %arg4[%c2, %c0_15, %c0_16] : memref<4x16x32xbf16, #tpu.memory_space<vmem>>, vector<1x16x32xbf16>
    %25 = vector.shape_cast %24 : vector<1x16x32xbf16> to vector<16x32xbf16>
    %cst_17 = arith.constant dense<0.000000e+00> : vector<16x32xf32>
    %26 = tpu.matmul %23, %25, %cst_17 {dimension_numbers = #tpu.dot_dimension_numbers<[1], [0], [0], [1], [0, 0, 1, 1], [], []>} : vector<16x16xbf16>, vector<16x32xbf16>, vector<16x32xf32> -> vector<16x32xf32>
    %27 = arith.addf %18, %26 : vector<16x32xf32>
    %c1_i32_18 = arith.constant 1 : i32
    %28 = arith.addi %1, %c1_i32_18 : i32
    %c0_19 = arith.constant 0 : index
    %29 = arith.index_cast %28 : i32 to index
    %c1_20 = arith.constant 1 : index
    %c0_21 = arith.constant 0 : index
    %30 = vector.load %arg3[%c0_19, %29, %c1_20, %c0_21] : memref<1x9x9x16xbf16, #tpu.memory_space<vmem>>, vector<1x2x8x16xbf16>
    %31 = vector.shape_cast %30 : vector<1x2x8x16xbf16> to vector<2x8x16xbf16>
    %32 = vector.shape_cast %31 : vector<2x8x16xbf16> to vector<16x16xbf16>
    %c3 = arith.constant 3 : index
    %c0_22 = arith.constant 0 : index
    %c0_23 = arith.constant 0 : index
    %33 = vector.load %arg4[%c3, %c0_22, %c0_23] : memref<4x16x32xbf16, #tpu.memory_space<vmem>>, vector<1x16x32xbf16>
    %34 = vector.shape_cast %33 : vector<1x16x32xbf16> to vector<16x32xbf16>
    %cst_24 = arith.constant dense<0.000000e+00> : vector<16x32xf32>
    %35 = tpu.matmul %32, %34, %cst_24 {dimension_numbers = #tpu.dot_dimension_numbers<[1], [0], [0], [1], [0, 0, 1, 1], [], []>} : vector<16x16xbf16>, vector<16x32xbf16>, vector<16x32xf32> -> vector<16x32xf32>
    %36 = arith.addf %27, %35 : vector<16x32xf32>
    %c0_25 = arith.constant 0 : index
    %c0_26 = arith.constant 0 : index
    %37 = vector.load %arg5[%c0_25, %c0_26] : memref<1x32xf32, #tpu.memory_space<vmem>>, vector<1x32xf32>
    %38 = vector.broadcast %37 : vector<1x32xf32> to vector<16x32xf32>
    %39 = arith.addf %36, %38 : vector<16x32xf32>
    %cst_27 = arith.constant 0.000000e+00 : f32
    %40 = vector.broadcast %cst_27 : f32 to vector<16x32xf32>
    %41 = arith.maximumf %39, %40 : vector<16x32xf32>
    %c0_28 = arith.constant 0 : index
    %c0_29 = arith.constant 0 : index
    %c0_30 = arith.constant 0 : index
    %42 = vector.load %arg6[%c0_28, %c0_29, %c0_30] : memref<1x16x32xf32, #tpu.memory_space<vmem>>, vector<1x16x32xf32>
    %43 = vector.shape_cast %42 : vector<1x16x32xf32> to vector<16x32xf32>
    %44 = vector.shape_cast %41 : vector<16x32xf32> to vector<1x16x32xf32>
    tpu.vector_store %arg6[%c0_28, %c0_29, %c0_30], %44 {strides = array<i32>} : memref<1x16x32xf32, #tpu.memory_space<vmem>>, vector<1x16x32xf32>,
    return
  }
  func.func @transform_0(%arg0: i32, %arg1: i32, %arg2: i32) -> (i32, i32, i32, i32) {
    %c0_i32 = arith.constant 0 : i32
    %c0_i32_0 = arith.constant 0 : i32
    %c0_i32_1 = arith.constant 0 : i32
    %c0_i32_2 = arith.constant 0 : i32
    return %arg0, %c0_i32, %c0_i32_0, %c0_i32_1 : i32, i32, i32, i32
  }
  func.func @transform_1(%arg0: i32, %arg1: i32, %arg2: i32) -> (i32, i32, i32) {
    %c0_i32 = arith.constant 0 : i32
    %c0_i32_0 = arith.constant 0 : i32
    %c0_i32_1 = arith.constant 0 : i32
    return %c0_i32, %c0_i32_0, %arg1 : i32, i32, i32
  }
  func.func @transform_2(%arg0: i32, %arg1: i32, %arg2: i32) -> (i32, i32) {
    %c0_i32 = arith.constant 0 : i32
    %c0_i32_0 = arith.constant 0 : i32
    return %c0_i32, %arg1 : i32, i32
  }
  func.func @transform_3(%arg0: i32, %arg1: i32, %arg2: i32) -> (i32, i32, i32) {
    %c0_i32 = arith.constant 0 : i32
    return %arg0, %arg2, %arg1 : i32, i32, i32
  }
}

</mosaic_0001>

<llo_original>
// kernel: conv_bias_relu_pallas.1
$region0: #{conv_bias_relu_pallas.1}
  #allocation0 [shape = 'u32[]', space=smem, size = 0x4, offset = 0x4, fixed_abs, tag = 'smem constant byte address 0x4 - core index']
  #allocation1 [shape = 'u32[144,128]{1,0:T(1,128)}', space=vmem, size = 0x12000, scoped, tag = 'internal scratch']
  %s0 = inlined_call_operand.vmem [shape: bf16[2,9,9,16], index: 0, kind: input, shape index: {}]
  %s1 = inlined_call_operand.vmem [shape: bf16[4,16,32], index: 1, kind: input, shape index: {}]
  %s2 = inlined_call_operand.vmem [shape: f32[1,32], index: 2, kind: input, shape index: {}]
  %s3 = inlined_call_operand.hbm [shape: f32[2,64,32], index: 3, kind: output, shape index: {}]
  %s4 = sld [smem:[#allocation0]]
  $region45: #{conv_bias_relu_pallas.1} parent=0
    _
  %s6 = ssub.s32 1, %s4
  %s7 = scalar_select 0, %s6, %s4
  $region1: #{conv_bias_relu_pallas.1} parent=0
    #allocation2 [shape = 'u8[16384]{0}', space=vmem, size = 0x4000, scoped, tag = 'output window, operand 0']
    #allocation3 [shape = 's32[2]{0}', space=sflag, size = 0x8, scoped, tag = 'scoped memory for conv_bias_relu_pallas.1']
    %8 = vsyncpa [#allocation3], 0
    %s9 = scalar_lea.sflag [#allocation3], 1
    %10 = vsyncpa %s9, 0
    loop: start=0, step=1, limit=10
    $region2: #{conv_bias_relu_pallas.1} parent=1 // loop_pre_header
      _
    $region3: #{conv_bias_relu_pallas.1} parent=1 // loop_header
      %s12 = sphi 0, %s16
      %p13 = scmp.ge.s32.totalorder %s12, 10
      %s19 = sphi 0, %s38
      %s20 = sphi 0, %s34
      %s21 = sphi 0, %s30
      %s22 = sphi 0, %s19
      %s23 = sphi 0, %s20
      %s24 = sphi 0, %s21
      %s25 = sphi 0, %s22
      %s26 = sphi 0, %s23
      %s27 = sphi 0, %s24
      %s41 = sphi 0, %s43
      %s44 = sphi 0, %s41
      %s45 = sphi 0, %s44
      %s61 = sphi 0, %s45
      %s67 = sphi 0, %s69
      %s70 = sphi 0, %s67
      %s71 = sphi 0, %s70
      %s87 = sphi 0, %s71
      %s93 = sphi 0, %s95
      %s96 = sphi 0, %s93
      %s97 = sphi 0, %s96
      %s113 = sphi 0, %s97
      %s123 = sphi 0, %s125
      %s126 = sphi 0, %s123
      %s127 = sphi 0, %s126
      %s143 = sphi 0, %s127
    $region4: #{conv_bias_relu_pallas.1} parent=1 // loop_header_branch
      %15 = sbr.rel (%p13) target = $region8
    $region5: #{conv_bias_relu_pallas.1} parent=1 // loop_body
      %s17 = ssub.s32 %s12, 1
      %s18 = ssub.s32 %s12, 2
      %s28 = sadd.s32 1, %s21
      %p29 = scmp.ge.s32.totalorder %s28, 4
      %s30 = scalar_select %p29, 0, %s28
      %s31 = sadd.s32 1, %s20
      %s32 = scalar_select %p29, %s31, %s20
      %p33 = scmp.ge.s32.totalorder %s32, 1
      %s34 = scalar_select %p33, 0, %s32
      %s35 = sadd.s32 1, %s19
      %s36 = scalar_select %p33, %s35, %s19
      %p37 = scmp.ge.s32.totalorder %s36, 2
      %s38 = scalar_select %p37, 0, %s36
      %s39 = ssub.s32 %s19, %s38
      %p40 = scmp.eq.s32.totalorder %s39, 0
      %s42 = sadd.s32 %s41, 1
      %s43 = scalar_select %p40, %s41, %s42
      %p46 = pneg %p40
      %p47 = scmp.eq.s32.totalorder %s12, 7
      %p48 = por %p46, %p47
      %p49 = scmp.ne.s32.totalorder %s41, %s44
      %p50 = scmp.eq.s32.totalorder %s12, 0
      %p51 = por %p49, %p50
      %p52 = scmp.ne.s32.totalorder %s41, %s44
      %p53 = scmp.eq.s32.totalorder %s17, 7
      %p54 = por %p52, %p53
      %p55 = scmp.ne.s32.totalorder %s44, %s45
      %p56 = scmp.eq.s32.totalorder %s17, 0
      %p57 = por %p55, %p56
      %p58 = scmp.ne.s32.totalorder %s44, %s45
      %p59 = scmp.eq.s32.totalorder %s18, 7
      %p60 = por %p58, %p59
      %p62 = scmp.ne.s32.totalorder %s45, %s61
      %p63 = scmp.eq.s32.totalorder %s18, 0
      %p64 = por %p62, %p63
      %s65 = ssub.s32 %s20, %s34
      %p66 = scmp.eq.s32.totalorder %s65, 0
      %s68 = sadd.s32 %s67, 1
      %s69 = scalar_select %p66, %s67, %s68
      %p72 = pneg %p66
      %p73 = scmp.eq.s32.totalorder %s12, 7
      %p74 = por %p72, %p73
      %p75 = scmp.ne.s32.totalorder %s67, %s70
      %p76 = scmp.eq.s32.totalorder %s12, 0
      %p77 = por %p75, %p76
      %p78 = scmp.ne.s32.totalorder %s67, %s70
      %p79 = scmp.eq.s32.totalorder %s17, 7
      %p80 = por %p78, %p79
      %p81 = scmp.ne.s32.totalorder %s70, %s71
      %p82 = scmp.eq.s32.totalorder %s17, 0
      %p83 = por %p81, %p82
      %p84 = scmp.ne.s32.totalorder %s70, %s71
      %p85 = scmp.eq.s32.totalorder %s18, 7
      %p86 = por %p84, %p85
      %p88 = scmp.ne.s32.totalorder %s71, %s87
      %p89 = scmp.eq.s32.totalorder %s18, 0
      %p90 = por %p88, %p89
      %s91 = ssub.s32 %s20, %s34
      %p92 = scmp.eq.s32.totalorder %s91, 0
      %s94 = sadd.s32 %s93, 1
      %s95 = scalar_select %p92, %s93, %s94
      %p98 = pneg %p92
      %p99 = scmp.eq.s32.totalorder %s12, 7
      %p100 = por %p98, %p99
      %p101 = scmp.ne.s32.totalorder %s93, %s96
      %p102 = scmp.eq.s32.totalorder %s12, 0
      %p103 = por %p101, %p102
      %p104 = scmp.ne.s32.totalorder %s93, %s96
      %p105 = scmp.eq.s32.totalorder %s17, 7
      %p106 = por %p104, %p105
      %p107 = scmp.ne.s32.totalorder %s96, %s97
      %p108 = scmp.eq.s32.totalorder %s17, 0
      %p109 = por %p107, %p108
      %p110 = scmp.ne.s32.totalorder %s96, %s97
      %p111 = scmp.eq.s32.totalorder %s18, 7
      %p112 = por %p110, %p111
      %p114 = scmp.ne.s32.totalorder %s97, %s113
      %p115 = scmp.eq.s32.totalorder %s18, 0
      %p116 = por %p114, %p115
      %s117 = ssub.s32 %s19, %s38
      %s118 = ssub.s32 %s21, %s30
      %s119 = sor.u32 %s117, %s118
      %s120 = ssub.s32 %s20, %s34
      %s121 = sor.u32 %s119, %s120
      %p122 = scmp.eq.s32.totalorder %s121, 0
      %s124 = sadd.s32 %s123, 1
      %s125 = scalar_select %p122, %s123, %s124
      %p128 = pneg %p122
      %p129 = scmp.eq.s32.totalorder %s12, 7
      %p130 = por %p128, %p129
      %p131 = scmp.ne.s32.totalorder %s123, %s126
      %p132 = scmp.eq.s32.totalorder %s12, 0
      %p133 = por %p131, %p132
      %p134 = scmp.ne.s32.totalorder %s123, %s126
      %p135 = scmp.eq.s32.totalorder %s17, 7
      %p136 = por %p134, %p135
      %p137 = scmp.ne.s32.totalorder %s126, %s127
      %p138 = scmp.eq.s32.totalorder %s17, 0
      %p139 = por %p137, %p138
      %p140 = scmp.ne.s32.totalorder %s126, %s127
      %p141 = scmp.eq.s32.totalorder %s18, 7
      %p142 = por %p140, %p141
      %p144 = scmp.ne.s32.totalorder %s127, %s143
      %p145 = scmp.eq.s32.totalorder %s18, 0
      %p146 = por %p144, %p145
      %p147 = scmp.le.s32.totalorder 1, %s12
      %p148 = scmp.lt.s32.totalorder %s12, 9
      %p149 = pnand %p147, %p148
      %p150 = pneg %p149
      // Predicated region
      $region9: #{conv_bias_relu_pallas.1} parent=5 // pred_check
        _
      $region10: #{conv_bias_relu_pallas.1} parent=5 // pred_check_branch
        %152 = sbr.rel (%p149) target = $region12
      $region11: #{conv_bias_relu_pallas.1} parent=5 // pred_region
        %s153 = ssub.s32 %s12, 1
        // Predicated region
        $region13: #{conv_bias_relu_pallas.1} parent=11 // pred_check
          %p154 = pneg %p83
        $region14: #{conv_bias_relu_pallas.1} parent=11 // pred_check_branch
          %156 = sbr.rel (%p154) target = $region16
        $region15: #{conv_bias_relu_pallas.1} parent=11 // pred_region
          %p157 = scmp.lt.s32.totalorder %s23, 0
          %s158 = scalar_select %p157, %s23, 0
          %s159 = smul.addr %s158, 4
          %s160 = scalar_lea.vmem %s1, %s159
        $region16: #{conv_bias_relu_pallas.1} parent=11 // pred_fallthru
          _
        // Predicated region
        $region17: #{conv_bias_relu_pallas.1} parent=11 // pred_check
          %p161 = pneg %p109
        $region18: #{conv_bias_relu_pallas.1} parent=11 // pred_check_branch
          %163 = sbr.rel (%p161) target = $region20
        $region19: #{conv_bias_relu_pallas.1} parent=11 // pred_region
          %p164 = scmp.lt.s32.totalorder %s23, 0
          %s165 = scalar_select %p164, %s23, 0
          %s166 = scalar_lea.vmem %s2, %s165
        $region20: #{conv_bias_relu_pallas.1} parent=11 // pred_fallthru
          _
      $region12: #{conv_bias_relu_pallas.1} parent=5 // pred_fallthru
        _
      %p167 = scmp.lt.s32.totalorder %s12, 8
      // Predicated region
      $region21: #{conv_bias_relu_pallas.1} parent=5 // pred_check
        %p168 = pneg %p167
      $region22: #{conv_bias_relu_pallas.1} parent=5 // pred_check_branch
        %170 = sbr.rel (%p168) target = $region24
      $region23: #{conv_bias_relu_pallas.1} parent=5 // pred_region
        // Predicated region
        $region25: #{conv_bias_relu_pallas.1} parent=23 // pred_check
          %p171 = pneg %p51
        $region26: #{conv_bias_relu_pallas.1} parent=23 // pred_check_branch
          %173 = sbr.rel (%p171) target = $region28
        $region27: #{conv_bias_relu_pallas.1} parent=23 // pred_region
          %p174 = scmp.lt.s32.totalorder %s19, 1
          %s175 = scalar_select %p174, %s19, 1
          %s176 = smul.addr %s175, 18
          %s177 = smul.addr %s176, 4
          %s178 = scalar_lea.vmem %s0, %s177
        $region28: #{conv_bias_relu_pallas.1} parent=23 // pred_fallthru
          _
      $region24: #{conv_bias_relu_pallas.1} parent=5 // pred_fallthru
        _
      %p179 = scmp.le.s32.totalorder 1, %s12
      %p180 = scmp.lt.s32.totalorder %s12, 9
      %p181 = pnand %p179, %p180
      %p182 = pneg %p181
      // Predicated region
      $region29: #{conv_bias_relu_pallas.1} parent=5 // pred_check
        _
      $region30: #{conv_bias_relu_pallas.1} parent=5 // pred_check_branch
        %184 = sbr.rel (%p181) target = $region32
      $region31: #{conv_bias_relu_pallas.1} parent=5 // pred_region
        %s185 = ssub.s32 %s12, 1
        %p186 = scmp.lt.s32.totalorder %s22, 1
        %s187 = scalar_select %p186, %s22, 1
        %s188 = smul.addr %s187, 18
        %s189 = smul.addr %s188, 4
        %s190 = scalar_lea.vmem %s0, %s189
        %p191 = pneg %p57
        %p192 = pneg %p54
        %p193 = scmp.lt.s32.totalorder %s23, 0
        %s194 = scalar_select %p193, %s23, 0
        %s195 = smul.addr %s194, 4
        %s196 = scalar_lea.vmem %s1, %s195
        %p197 = pneg %p83
        %p198 = pneg %p80
        %p199 = scmp.lt.s32.totalorder %s23, 0
        %s200 = scalar_select %p199, %s23, 0
        %s201 = scalar_lea.vmem %s2, %s200
        %p202 = pneg %p109
        %p203 = pneg %p106
        %p204 = pneg %p139
        %p205 = pneg %p136
        %s206 = sand.u32 %s126, 1
        %s207 = scalar_lea.sflag [#allocation3], %s206
        %s208 = sand.u32 %s126, 1
        %s209 = smul.addr %s208, 16
        %s210 = scalar_lea.vmem [#allocation2], %s209
        %p211 = scmp.lt.s32.totalorder %s22, 1
        %s212 = scalar_select %p211, %s22, 1
        %s213 = smul.addr %s212, 18
        %s214 = smul.addr %s213, 4
        %s215 = scalar_lea.vmem %s0, %s214
        %p216 = scmp.lt.s32.totalorder %s23, 0
        %s217 = scalar_select %p216, %s23, 0
        %s218 = smul.addr %s217, 4
        %s219 = scalar_lea.vmem %s1, %s218
        %p220 = scmp.lt.s32.totalorder %s23, 0
        %s221 = scalar_select %p220, %s23, 0
        %s222 = scalar_lea.vmem %s2, %s221
        %s223 = smul.u32 2, %s24
        %s225 = smul.u32 %s24, 2
        %s226 = smul.u32 %s225, 2
        %s227 = smul.addr %s226, 4
        %s228 = scalar_lea.vmem %s215, %s227
        %v229 = vld [vmem:[%s228] sm:$0xf]
        %v230 = vld [vmem:[%s228 + $0x8] sm:$0xf]
        %v231 = vld [vmem:[%s219] sm:$0xf]
        %v232 = vld [vmem:[%s219 + $0x4] sm:$0xf]
        %v233 = vld [vmem:[%s228 + $0x4] sm:$0x1]
        %v234 = vld [vmem:[%s228 + $0xc] sm:$0x1]
        %vm235 = vsmask.f32 3328
        %vm236 = vsmask.f32 7440
        %vm237 = vmor %vm235, %vm236
        %v239 = vshrl.u32 %v229, 16
        %v241 = vrot.slane %v239, 4
        %v242 = vshll.u32 %v229, 16
        %v244 = vrot.slane %v242, 5
        %v245 = vor.u32 %v241, %v244
        %v246 = vrot.slane %v245, 4
        %v248 = vshll.u32 %v233, 16
        %v250 = vrot.slane %v248, 5
        %v251 = vsel %vm237, %v246, %v250
        %v253 = vshrl.u32 %v230, 16
        %v255 = vrot.slane %v253, 4
        %v256 = vshll.u32 %v230, 16
        %v258 = vrot.slane %v256, 5
        %v259 = vor.u32 %v255, %v258
        %v260 = vrot.slane %v259, 4
        %v262 = vshll.u32 %v234, 16
        %v264 = vrot.slane %v262, 5
        %v265 = vsel %vm237, %v260, %v264
        %s266 = scalar_lea.vmem %s219, 8
        %v267 = vld [vmem:[%s266] sm:$0xf]
        %v268 = vld [vmem:[%s266 + $0x4] sm:$0xf]
        %v269 = vunpack.c.l.b16 %v251
        %v270 = vunpack.c.l.b16 %v265
        %v271 = vpack.c.b16 %v270, %v269
        %v274 = vunpack.c.l.b16 %v267
        %v275 = vunpack.c.l.b16 %v268
        %v276 = vpack.c.b16 %v275, %v274
        %vm278 = vcmask 130048
        %v280 = vsel %vm278, %v271, 0
        %282 = vmatprep.subr.bf16.mxu0 0
        %283 = vmatpush1.bf16.msra.mxu0 %v276
        %284 = vmatprep.subr.bf16.mxu0 0
        %285 = vmatpush1.bf16.msra.mxu0 0
        %286 = vmatprep.subr.bf16.mxu0 0
        %287 = vmatpush1.bf16.msra.mxu0 0
        %288 = vmatprep.subr.bf16.mxu0 0
        %289 = vmatpush1.bf16.msra.mxu0 0
        %290 = vmatprep.subr.bf16.mxu0 0
        %291 = vmatpush1.bf16.msra.mxu0 0
        %292 = vmatprep.subr.bf16.mxu0 0
        %293 = vmatpush1.bf16.msra.mxu0 0
        %294 = vmatprep.subr.bf16.mxu0 0
        %295 = vmatpush1.bf16.msra.mxu0 0
        %296 = vmatprep.subr.bf16.mxu0 0
        %297 = vmatpush1.bf16.msra.mxu0 0
        %298 = vmatprep.subr.bf16.mxu0 0
        %299 = vmatpush1.bf16.msra.mxu0 0
        %300 = vmatprep.subr.bf16.mxu0 0
        %301 = vmatpush1.bf16.msra.mxu0 0
        %302 = vmatprep.subr.bf16.mxu0 0
        %303 = vmatpush1.bf16.msra.mxu0 0
        %304 = vmatprep.subr.bf16.mxu0 0
        %305 = vmatpush1.bf16.msra.mxu0 0
        %306 = vmatprep.subr.bf16.mxu0 0
        %307 = vmatpush1.bf16.msra.mxu0 0
        %308 = vmatprep.subr.bf16.mxu0 0
        %309 = vmatpush1.bf16.msra.mxu0 0
        %310 = vmatprep.subr.bf16.mxu0 0
        %311 = vmatpush1.bf16.msra.mxu0 0
        %312 = vmatprep.subr.bf16.mxu0 0
        %313 = vmatpush1.bf16.msra.mxu0 0
        %314 = vmatprep.mubr.bf16.mxu0 0
        %315 = vmatmul.mubr.bf16.gmra.mrb[0].mxu0 %v280
        %v316 = vpop.f32.mrb[0].mxu0
        %v317 = vadd.f32 0.0, %v316
        %v318 = vpop.f32.mrb[0].mxu0
        %v319 = vpop.f32.mrb[0].mxu0
        %v320 = vadd.f32 0.0, %v319
        %v321 = vpop.f32.mrb[0].mxu0
        %322 = vdwg.mxu0
        %v325 = vunpack.c.l.b16 %v229
        %v326 = vunpack.c.l.b16 %v230
        %v327 = vpack.c.b16 %v326, %v325
        %v330 = vunpack.c.l.b16 %v231
        %v331 = vunpack.c.l.b16 %v232
        %v332 = vpack.c.b16 %v331, %v330
        %v335 = vsel %vm278, %v327, 0
        %337 = vmatprep.subr.bf16.mxu0 0
        %338 = vmatpush1.bf16.msra.mxu0 %v332
        %339 = vmatprep.subr.bf16.mxu0 0
        %340 = vmatpush1.bf16.msra.mxu0 0
        %341 = vmatprep.subr.bf16.mxu0 0
        %342 = vmatpush1.bf16.msra.mxu0 0
        %343 = vmatprep.subr.bf16.mxu0 0
        %344 = vmatpush1.bf16.msra.mxu0 0
        %345 = vmatprep.subr.bf16.mxu0 0
        %346 = vmatpush1.bf16.msra.mxu0 0
        %347 = vmatprep.subr.bf16.mxu0 0
        %348 = vmatpush1.bf16.msra.mxu0 0
        %349 = vmatprep.subr.bf16.mxu0 0
        %350 = vmatpush1.bf16.msra.mxu0 0
        %351 = vmatprep.subr.bf16.mxu0 0
        %352 = vmatpush1.bf16.msra.mxu0 0
        %353 = vmatprep.subr.bf16.mxu0 0
        %354 = vmatpush1.bf16.msra.mxu0 0
        %355 = vmatprep.subr.bf16.mxu0 0
        %356 = vmatpush1.bf16.msra.mxu0 0
        %357 = vmatprep.subr.bf16.mxu0 0
        %358 = vmatpush1.bf16.msra.mxu0 0
        %359 = vmatprep.subr.bf16.mxu0 0
        %360 = vmatpush1.bf16.msra.mxu0 0
        %361 = vmatprep.subr.bf16.mxu0 0
        %362 = vmatpush1.bf16.msra.mxu0 0
        %363 = vmatprep.subr.bf16.mxu0 0
        %364 = vmatpush1.bf16.msra.mxu0 0
        %365 = vmatprep.subr.bf16.mxu0 0
        %366 = vmatpush1.bf16.msra.mxu0 0
        %367 = vmatprep.subr.bf16.mxu0 0
        %368 = vmatpush1.bf16.msra.mxu0 0
        %369 = vmatprep.mubr.bf16.mxu0 0
        %370 = vmatmul.mubr.bf16.gmra.mrb[0].mxu0 %v335
        %v371 = vpop.f32.mrb[0].mxu0
        %v372 = vadd.f32 %v317, %v371
        %v373 = vpop.f32.mrb[0].mxu0
        %v374 = vpop.f32.mrb[0].mxu0
        %v375 = vadd.f32 %v320, %v374
        %v376 = vpop.f32.mrb[0].mxu0
        %377 = vdwg.mxu0
        %s378 = sadd.s32 %s225, 1
        %s379 = smul.u32 %s378, 2
        %s380 = smul.addr %s379, 4
        %s381 = scalar_lea.vmem %s215, %s380
        %v382 = vld [vmem:[%s381] sm:$0xf]
        %v383 = vld [vmem:[%s381 + $0x8] sm:$0xf]
        %s384 = scalar_lea.vmem %s219, 16
        %v385 = vld [vmem:[%s384] sm:$0xf]
        %v386 = vld [vmem:[%s384 + $0x4] sm:$0xf]
        %v389 = vunpack.c.l.b16 %v382
        %v390 = vunpack.c.l.b16 %v383
        %v391 = vpack.c.b16 %v390, %v389
        %v394 = vunpack.c.l.b16 %v385
        %v395 = vunpack.c.l.b16 %v386
        %v396 = vpack.c.b16 %v395, %v394
        %v399 = vsel %vm278, %v391, 0
        %401 = vmatprep.subr.bf16.mxu0 0
        %402 = vmatpush1.bf16.msra.mxu0 %v396
        %403 = vmatprep.subr.bf16.mxu0 0
        %404 = vmatpush1.bf16.msra.mxu0 0
        %405 = vmatprep.subr.bf16.mxu0 0
        %406 = vmatpush1.bf16.msra.mxu0 0
        %407 = vmatprep.subr.bf16.mxu0 0
        %408 = vmatpush1.bf16.msra.mxu0 0
        %409 = vmatprep.subr.bf16.mxu0 0
        %410 = vmatpush1.bf16.msra.mxu0 0
        %411 = vmatprep.subr.bf16.mxu0 0
        %412 = vmatpush1.bf16.msra.mxu0 0
        %413 = vmatprep.subr.bf16.mxu0 0
        %414 = vmatpush1.bf16.msra.mxu0 0
        %415 = vmatprep.subr.bf16.mxu0 0
        %416 = vmatpush1.bf16.msra.mxu0 0
        %417 = vmatprep.subr.bf16.mxu0 0
        %418 = vmatpush1.bf16.msra.mxu0 0
        %419 = vmatprep.subr.bf16.mxu0 0
        %420 = vmatpush1.bf16.msra.mxu0 0
        %421 = vmatprep.subr.bf16.mxu0 0
        %422 = vmatpush1.bf16.msra.mxu0 0
        %423 = vmatprep.subr.bf16.mxu0 0
        %424 = vmatpush1.bf16.msra.mxu0 0
        %425 = vmatprep.subr.bf16.mxu0 0
        %426 = vmatpush1.bf16.msra.mxu0 0
        %427 = vmatprep.subr.bf16.mxu0 0
        %428 = vmatpush1.bf16.msra.mxu0 0
        %429 = vmatprep.subr.bf16.mxu0 0
        %430 = vmatpush1.bf16.msra.mxu0 0
        %431 = vmatprep.subr.bf16.mxu0 0
        %432 = vmatpush1.bf16.msra.mxu0 0
        %433 = vmatprep.mubr.bf16.mxu0 0
        %434 = vmatmul.mubr.bf16.gmra.mrb[0].mxu0 %v399
        %v435 = vpop.f32.mrb[0].mxu0
        %v436 = vadd.f32 0.0, %v435
        %v437 = vpop.f32.mrb[0].mxu0
        %v438 = vpop.f32.mrb[0].mxu0
        %v439 = vadd.f32 0.0, %v438
        %v440 = vpop.f32.mrb[0].mxu0
        %441 = vdwg.mxu0
        %v442 = vadd.f32 %v372, %v436
        %v443 = vadd.f32 %v375, %v439
        %v444 = vld [vmem:[%s381] sm:$0xf]
        %v445 = vld [vmem:[%s381 + $0x4] sm:$0x1]
        %v446 = vld [vmem:[%s381 + $0x8] sm:$0xf]
        %v447 = vld [vmem:[%s381 + $0xc] sm:$0x1]
        %v449 = vshrl.u32 %v444, 16
        %v451 = vrot.slane %v449, 4
        %v452 = vshll.u32 %v444, 16
        %v454 = vrot.slane %v452, 5
        %v455 = vor.u32 %v451, %v454
        %v456 = vrot.slane %v455, 4
        %v458 = vshll.u32 %v445, 16
        %v460 = vrot.slane %v458, 5
        %v461 = vsel %vm237, %v456, %v460
        %v463 = vshrl.u32 %v446, 16
        %v465 = vrot.slane %v463, 4
        %v466 = vshll.u32 %v446, 16
        %v468 = vrot.slane %v466, 5
        %v469 = vor.u32 %v465, %v468
        %v470 = vrot.slane %v469, 4
        %v472 = vshll.u32 %v447, 16
        %v474 = vrot.slane %v472, 5
        %v475 = vsel %vm237, %v470, %v474
        %s476 = scalar_lea.vmem %s219, 24
        %v477 = vld [vmem:[%s476] sm:$0xf]
        %v478 = vld [vmem:[%s476 + $0x4] sm:$0xf]
        %v479 = vunpack.c.l.b16 %v461
        %v480 = vunpack.c.l.b16 %v475
        %v481 = vpack.c.b16 %v480, %v479
        %v484 = vunpack.c.l.b16 %v477
        %v485 = vunpack.c.l.b16 %v478
        %v486 = vpack.c.b16 %v485, %v484
        %v489 = vsel %vm278, %v481, 0
        %491 = vmatprep.subr.bf16.mxu0 0
        %492 = vmatpush1.bf16.msra.mxu0 %v486
        %493 = vmatprep.subr.bf16.mxu0 0
        %494 = vmatpush1.bf16.msra.mxu0 0
        %495 = vmatprep.subr.bf16.mxu0 0
        %496 = vmatpush1.bf16.msra.mxu0 0
        %497 = vmatprep.subr.bf16.mxu0 0
        %498 = vmatpush1.bf16.msra.mxu0 0
        %499 = vmatprep.subr.bf16.mxu0 0
        %500 = vmatpush1.bf16.msra.mxu0 0
        %501 = vmatprep.subr.bf16.mxu0 0
        %502 = vmatpush1.bf16.msra.mxu0 0
        %503 = vmatprep.subr.bf16.mxu0 0
        %504 = vmatpush1.bf16.msra.mxu0 0
        %505 = vmatprep.subr.bf16.mxu0 0
        %506 = vmatpush1.bf16.msra.mxu0 0
        %507 = vmatprep.subr.bf16.mxu0 0
        %508 = vmatpush1.bf16.msra.mxu0 0
        %509 = vmatprep.subr.bf16.mxu0 0
        %510 = vmatpush1.bf16.msra.mxu0 0
        %511 = vmatprep.subr.bf16.mxu0 0
        %512 = vmatpush1.bf16.msra.mxu0 0
        %513 = vmatprep.subr.bf16.mxu0 0
        %514 = vmatpush1.bf16.msra.mxu0 0
        %515 = vmatprep.subr.bf16.mxu0 0
        %516 = vmatpush1.bf16.msra.mxu0 0
        %517 = vmatprep.subr.bf16.mxu0 0
        %518 = vmatpush1.bf16.msra.mxu0 0
        %519 = vmatprep.subr.bf16.mxu0 0
        %520 = vmatpush1.bf16.msra.mxu0 0
        %521 = vmatprep.subr.bf16.mxu0 0
        %522 = vmatpush1.bf16.msra.mxu0 0
        %523 = vmatprep.mubr.bf16.mxu0 0
        %524 = vmatmul.mubr.bf16.gmra.mrb[0].mxu0 %v489
        %v525 = vpop.f32.mrb[0].mxu0
        %v526 = vadd.f32 0.0, %v525
        %v527 = vpop.f32.mrb[0].mxu0
        %v528 = vpop.f32.mrb[0].mxu0
        %v529 = vadd.f32 0.0, %v528
        %v530 = vpop.f32.mrb[0].mxu0
        %531 = vdwg.mxu0
        %v532 = vadd.f32 %v442, %v526
        %v533 = vadd.f32 %v443, %v529
        %v534 = vld [vmem:[%s222] sm:$0x1]
        %v536 = vlaneseq
        %v537 = vshrl.u32 %v536, 7
        %v538 = vsub.s32 0, %v537
        %v539 = vrot.slane %v534, %v538
        %v541 = vadd.f32 %v532, %v539
        %v542 = vadd.f32 %v533, %v539
        %v543 = vmax.f32 %v541, 0.0
        %v544 = vmax.f32 %v542, 0.0
        %vm545 = vcmask 261120
        %546 = vst.msk [vmem:[%s210] sm:$0xff] %vm545, %v543
        %547 = vst.msk [vmem:[%s210 + $0x8] sm:$0xff] %vm545, %v544
        %s548 = sand.u32 %s126, 1
        %s549 = scalar_lea.sflag [#allocation3], %s548
        %s550 = sand.u32 %s126, 1
        %s551 = smul.addr %s550, 16
        %s552 = scalar_lea.vmem [#allocation2], %s551
        // Predicated region
        $region33: #{conv_bias_relu_pallas.1} parent=31 // pred_check
          %p553 = pneg %p136
        $region34: #{conv_bias_relu_pallas.1} parent=31 // pred_check_branch
          %555 = sbr.rel (%p553) target = $region36
        $region35: #{conv_bias_relu_pallas.1} parent=31 // pred_region
          %s556 = smul.u32 2, %s24
          %s558 = ssub.s32 256, 256
          %559 = vsyncadd %s549, %s558
          %s560 = sadd.s32 %s23, %s556
          %s561 = smul.addr %s22, 8
          %s562 = sadd.s32 %s560, %s561
          %s563 = smul.addr %s562, 128
          %s564 = scalar_lea.hbm %s3, %s563
          %s565 = sshll.u32 %s552, 4
          %s566 = int_to_ptr.vmem [resolvable:$true] %s565
          %571 = dma.vmem_to_hbm [thread:$0]  %s566, 256, %s564, %s549, 128, 128, 8
        $region36: #{conv_bias_relu_pallas.1} parent=31 // pred_fallthru
          _
      $region32: #{conv_bias_relu_pallas.1} parent=5 // pred_fallthru
        _
      %p572 = scmp.le.s32.totalorder 2, %s12
      // Predicated region
      $region37: #{conv_bias_relu_pallas.1} parent=5 // pred_check
        %p573 = pneg %p572
      $region38: #{conv_bias_relu_pallas.1} parent=5 // pred_check_branch
        %575 = sbr.rel (%p573) target = $region40
      $region39: #{conv_bias_relu_pallas.1} parent=5 // pred_region
        %s576 = ssub.s32 %s12, 2
        // Predicated region
        $region41: #{conv_bias_relu_pallas.1} parent=39 // pred_check
          %p577 = pneg %p142
        $region42: #{conv_bias_relu_pallas.1} parent=39 // pred_check_branch
          %579 = sbr.rel (%p577) target = $region44
        $region43: #{conv_bias_relu_pallas.1} parent=39 // pred_region
          %s580 = sand.u32 %s127, 1
          %s581 = scalar_lea.sflag [#allocation3], %s580
          %s582 = sand.u32 %s127, 1
          %s583 = smul.addr %s582, 16
          %s584 = scalar_lea.vmem [#allocation2], %s583
          %585 = dma.done %s581, 256
        $region44: #{conv_bias_relu_pallas.1} parent=39 // pred_fallthru
          _
      $region40: #{conv_bias_relu_pallas.1} parent=5 // pred_fallthru
        _
    $region6: #{conv_bias_relu_pallas.1} parent=1 // loop_footer
      %s16 = sadd.s32 1, %s12
    $region7: #{conv_bias_relu_pallas.1} parent=1 // loop_footer_branch
      %11 = sbr.rel target = $region3
    $region8: #{conv_bias_relu_pallas.1} parent=1 // loop_exit
      _
    %586 = vsyncpa [#allocation3], 1
    %s587 = scalar_lea.sflag [#allocation3], 1
    %588 = vsyncpa %s587, 1

</llo_original>
